<compile_context>
chip_gen: v7x
topology: tpu7x:2x2x1
jax: 0.10.0
libtpu: 0.0.40
codegen_flags: <defaults>
</compile_context>

<pallas_src>
import jax
import jax.numpy as jnp
from jax.experimental import pallas as pl
from jax.experimental.pallas import tpu as pltpu


def _normalize_kernel(scale_ref, bias_ref, x_ref, o_ref):
    # scale_ref / bias_ref: (1, Cb, 1, 128) in the compute dtype.
    # x_ref / o_ref:        (Nb, Cb, R, 128) lane-dense data tiles.
    scale = scale_ref[...]
    bias = bias_ref[...]
    x = x_ref[...].astype(scale.dtype)
    o_ref[...] = (x * scale + bias).astype(o_ref.dtype)


def _divisors(n):
    return [d for d in range(1, n + 1) if n % d == 0]


def _choose_blocks(n, c, r_tot, itemsize,
                   cap_bytes=2 * 1024 * 1024,
                   min_tile_bytes=1 * 1024 * 1024,
                   min_steps=8):
    """Pick (Nb, Cb, R) block sizes for the (N, C, r_tot, 128) view.

    - R is a multiple of 8 (dense sublanes) or the full r_tot (both legal per
      the (8, 128) block-shape rule).
    - Tile bytes Nb*Cb*R*128*itemsize are capped at `cap_bytes`, so the
      double-buffered in+out footprint stays < v5e's 16 MiB scoped VMEM.
    - Channels are split across the grid if C alone would blow the cap
      (large-C guard).
    - Batch is fused into the tile up to ~min_tile_bytes unconditionally, and
      beyond that only while the grid keeps >= min_steps steps (keeps both
      v7x TensorCores busy and the pipeline primed).
    """
    lane_bytes = 128 * itemsize
    row_cands = sorted({d for d in _divisors(r_tot) if d % 8 == 0} | {r_tot})
    min_row = row_cands[0]
    # Channel block: largest divisor of C whose minimal legal tile fits the cap.
    c_cands = [d for d in _divisors(c) if d * min_row * lane_bytes <= cap_bytes]
    cb = max(c_cands) if c_cands else 1
    # Row block: largest legal candidate within the cap.
    r_fit = [d for d in row_cands if cb * d * lane_bytes <= cap_bytes]
    r = max(r_fit) if r_fit else min_row
    # Batch fusion.
    nb = 1
    for d in _divisors(n):
        tile = d * cb * r * lane_bytes
        steps = (n // d) * (c // cb) * (r_tot // r)
        if tile <= cap_bytes and (tile <= min_tile_bytes or steps >= min_steps):
            nb = d
    return nb, cb, r


def normalizer_forward(x, mean, std):
    """Pallas equivalent of Normalizer.forward / normalize_fn.

    x:    (N, C, H, W)
    mean: (C,)
    std:  (C,)
    returns (N, C, H, W) with x.dtype
    """
    N, C, H, W = x.shape
    # Per-channel stats in float32 for the 1/std and -mean/std precompute;
    # compute dtype follows the stream (bf16 on bf16 inputs, else f32).
    mean = jnp.asarray(mean, dtype=jnp.float32)
    std = jnp.asarray(std, dtype=jnp.float32)
    compute_dtype = jnp.bfloat16 if x.dtype == jnp.bfloat16 else jnp.float32
    scale = (1.0 / std).reshape(1, C, 1, 1).astype(compute_dtype)
    bias = (-mean / std).reshape(1, C, 1, 1).astype(compute_dtype)
    # Pre-broadcast along lanes so the kernel FMA needs no per-step splat.
    scale = jnp.broadcast_to(scale, (1, C, 1, 128))
    bias = jnp.broadcast_to(bias, (1, C, 1, 128))

    HW = H * W
    pad = (-HW) % 128
    HWp = HW + pad
    x2 = x.reshape(N, C, HW)              # free reshape for NCHW row-major
    if pad:
        # Pad spatial to a multiple of 128 so every tile is lane-dense
        # (unmasked vst); padded lanes are sliced away below.
        x2 = jnp.pad(x2, ((0, 0), (0, 0), (0, pad)))
    r_tot = HWp // 128
    x4 = x2.reshape(N, C, r_tot, 128)

    itemsize = x.dtype.itemsize
    Nb, Cb, R = _choose_blocks(N, C, r_tot, itemsize)

    out4 = pl.pallas_call(
        _normalize_kernel,
        out_shape=jax.ShapeDtypeStruct((N, C, r_tot, 128), x.dtype),
        grid_spec=pl.GridSpec(
            grid=(N // Nb, C // Cb, r_tot // R),
            in_specs=[
                # Tiny per-channel scale/bias blocks stay VMEM-resident
                # (same block index for every (n, r) step).
                pl.BlockSpec((1, Cb, 1, 128), lambda n, c, r: (0, c, 0, 0)),
                pl.BlockSpec((1, Cb, 1, 128), lambda n, c, r: (0, c, 0, 0)),
                # Lane/sublane-dense (Nb, Cb, R, 128) data tiles.
                pl.BlockSpec((Nb, Cb, R, 128), lambda n, c, r: (n, c, r, 0)),
            ],
            out_specs=pl.BlockSpec((Nb, Cb, R, 128), lambda n, c, r: (n, c, r, 0)),
        ),
        compiler_params=pltpu.CompilerParams(
            dimension_semantics=("parallel", "parallel", "parallel"),
        ),
        cost_estimate=pl.CostEstimate(
            flops=2 * N * C * HWp,
            transcendentals=0,
            bytes_accessed=2 * N * C * HWp * itemsize,
        ),
    )(scale, bias, x4)

    out = out4.reshape(N, C, HWp)
    if pad:
        out = out[:, :, :HW]
    return out.reshape(N, C, H, W)


if __name__ == "__main__":
    key = jax.random.PRNGKey(0)
    N, C, H, W = 2, 4, 16, 16

    x = jax.random.normal(key, (N, C, H, W), dtype=jnp.float32)
    # Deterministic "buffer" init (ImageNet-style stats extended to C=4).
    mean = jnp.array([0.485, 0.456, 0.406, 0.5], dtype=jnp.float32)[:C]
    std = jnp.array([0.229, 0.224, 0.225, 0.25], dtype=jnp.float32)[:C]

    out = normalizer_forward(x, mean, std)
    out = jax.block_until_ready(out)

    # Reference check against plain-JAX broadcast normalize.
    ref = (x - mean[None, :, None, None]) / std[None, :, None, None]
    assert out.shape == x.shape and out.dtype == x.dtype
    assert jnp.allclose(out, ref, atol=1e-5, rtol=1e-5)

    print("KERNEL_OK")
</pallas_src>

<mosaic_0001>
module attributes {stable_mosaic.version = 11 : i64} {
  func.func @_normalize_kernel(%arg0: i32, %arg1: i32, %arg2: i32, %arg3: memref<1x4x1x128xf32, #tpu.memory_space<vmem>>, %arg4: memref<1x4x1x128xf32, #tpu.memory_space<vmem>>, %arg5: memref<2x4x2x128xf32, #tpu.memory_space<vmem>>, %arg6: memref<2x4x2x128xf32, #tpu.memory_space<vmem>>) attributes {dimension_semantics = [#tpu.dimension_semantics<parallel>, #tpu.dimension_semantics<parallel>, #tpu.dimension_semantics<parallel>], iteration_bounds = array<i64: 1, 1, 1>, scalar_prefetch = 0 : i64, scratch_operands = 0 : i64, tpu.core_type = #tpu.core_type<tc>, window_params = [{transform_indices = @transform_0, window_bounds = array<i64: 1, 4, 1, 128>}, {transform_indices = @transform_1, window_bounds = array<i64: 1, 4, 1, 128>}, {transform_indices = @transform_2, window_bounds = array<i64: 2, 4, 2, 128>}, {transform_indices = @transform_3, window_bounds = array<i64: 2, 4, 2, 128>}]} {
    %c0 = arith.constant 0 : index
    %c0_0 = arith.constant 0 : index
    %c0_1 = arith.constant 0 : index
    %c0_2 = arith.constant 0 : index
    %0 = vector.load %arg3[%c0, %c0_0, %c0_1, %c0_2] : memref<1x4x1x128xf32, #tpu.memory_space<vmem>>, vector<1x4x1x128xf32>
    %c0_3 = arith.constant 0 : index
    %c0_4 = arith.constant 0 : index
    %c0_5 = arith.constant 0 : index
    %c0_6 = arith.constant 0 : index
    %1 = vector.load %arg4[%c0_3, %c0_4, %c0_5, %c0_6] : memref<1x4x1x128xf32, #tpu.memory_space<vmem>>, vector<1x4x1x128xf32>
    %c0_7 = arith.constant 0 : index
    %c0_8 = arith.constant 0 : index
    %c0_9 = arith.constant 0 : index
    %c0_10 = arith.constant 0 : index
    %2 = vector.load %arg5[%c0_7, %c0_8, %c0_9, %c0_10] : memref<2x4x2x128xf32, #tpu.memory_space<vmem>>, vector<2x4x2x128xf32>
    %3 = vector.broadcast %0 : vector<1x4x1x128xf32> to vector<2x4x2x128xf32>
    %4 = arith.mulf %2, %3 : vector<2x4x2x128xf32>
    %5 = vector.broadcast %1 : vector<1x4x1x128xf32> to vector<2x4x2x128xf32>
    %6 = arith.addf %4, %5 : vector<2x4x2x128xf32>
    %c0_11 = arith.constant 0 : index
    %c0_12 = arith.constant 0 : index
    %c0_13 = arith.constant 0 : index
    %c0_14 = arith.constant 0 : index
    %7 = vector.load %arg6[%c0_11, %c0_12, %c0_13, %c0_14] : memref<2x4x2x128xf32, #tpu.memory_space<vmem>>, vector<2x4x2x128xf32>
    tpu.vector_store %arg6[%c0_11, %c0_12, %c0_13, %c0_14], %6 {strides = array<i32>} : memref<2x4x2x128xf32, #tpu.memory_space<vmem>>, vector<2x4x2x128xf32>,
    return
  }
  func.func @transform_0(%arg0: i32, %arg1: i32, %arg2: i32) -> (i32, i32, i32, i32) {
    %c0_i32 = arith.constant 0 : i32
    %c0_i32_0 = arith.constant 0 : i32
    %c0_i32_1 = arith.constant 0 : i32
    %c0_i32_2 = arith.constant 0 : i32
    return %c0_i32, %arg1, %c0_i32_0, %c0_i32_1 : i32, i32, i32, i32
  }
  func.func @transform_1(%arg0: i32, %arg1: i32, %arg2: i32) -> (i32, i32, i32, i32) {
    %c0_i32 = arith.constant 0 : i32
    %c0_i32_0 = arith.constant 0 : i32
    %c0_i32_1 = arith.constant 0 : i32
    %c0_i32_2 = arith.constant 0 : i32
    return %c0_i32, %arg1, %c0_i32_0, %c0_i32_1 : i32, i32, i32, i32
  }
  func.func @transform_2(%arg0: i32, %arg1: i32, %arg2: i32) -> (i32, i32, i32, i32) {
    %c0_i32 = arith.constant 0 : i32
    %c0_i32_0 = arith.constant 0 : i32
    return %arg0, %arg1, %arg2, %c0_i32 : i32, i32, i32, i32
  }
  func.func @transform_3(%arg0: i32, %arg1: i32, %arg2: i32) -> (i32, i32, i32, i32) {
    %c0_i32 = arith.constant 0 : i32
    %c0_i32_0 = arith.constant 0 : i32
    return %arg0, %arg1, %arg2, %c0_i32 : i32, i32, i32, i32
  }
}

</mosaic_0001>

<llo_original>
// kernel: tpu_custom_call.1
$region0: #{tpu_custom_call.1}
  #allocation0 [shape = 'u32[]', space=smem, size = 0x4, offset = 0x4, fixed_abs, tag = 'smem constant byte address 0x4 - core index']
  #allocation1 [shape = 'u32[144,128]{1,0:T(1,128)}', space=vmem, size = 0x12000, scoped, tag = 'internal scratch']
  %s0 = inlined_call_operand.hbm [shape: f32[1,4,1,128], index: 0, kind: input, shape index: {}]
  %s1 = inlined_call_operand.hbm [shape: f32[1,4,1,128], index: 1, kind: input, shape index: {}]
  %s2 = inlined_call_operand.hbm [shape: f32[2,4,2,128], index: 2, kind: input, shape index: {}]
  %s3 = inlined_call_operand.hbm [shape: f32[2,4,2,128], index: 3, kind: output, shape index: {}]
  %s4 = sld [smem:[#allocation0]]
  $region34: #{tpu_custom_call.1} parent=0
    _
  %s6 = ssub.s32 1, %s4
  %s7 = scalar_select 0, %s6, %s4
  $region1: #{tpu_custom_call.1} parent=0
    #allocation2 [shape = 'u8[2048]{0}', space=vmem, size = 0x800, scoped, tag = 'input window, operand 0, single buffered']
    #allocation3 [shape = 's32[1]{0}', space=sflag, size = 0x4, scoped, tag = 'scoped memory for tpu_custom_call.1']
    #allocation4 [shape = 's32[1]{0}', space=sflag, size = 0x4, scoped, tag = 'scoped memory for tpu_custom_call.1']
    #allocation5 [shape = 'u8[2048]{0}', space=vmem, size = 0x800, scoped, tag = 'input window, operand 1, single buffered']
    #allocation6 [shape = 's32[1]{0}', space=sflag, size = 0x4, scoped, tag = 'scoped memory for tpu_custom_call.1']
    #allocation7 [shape = 'u8[8192]{0}', space=vmem, size = 0x2000, scoped, tag = 'input window, operand 2, single buffered']
    #allocation8 [shape = 'u8[8192]{0}', space=vmem, size = 0x2000, scoped, tag = 'output window, operand 0, single buffered']
    %8 = vsyncpa [#allocation3], 0
    %9 = vsyncpa [#allocation6], 0
    %10 = vsyncpa [#allocation4], 0
    // Predicated region
    $region2: #{tpu_custom_call.1} parent=1 // pred_check
      _
    $region3: #{tpu_custom_call.1} parent=1 // pred_check_branch
      %12 = sbr.rel (0) target = $region5
    $region4: #{tpu_custom_call.1} parent=1 // pred_region
      %s14 = ssub.s32 64, 64
      %15 = vsyncadd [#allocation3], %s14
      %s16 = sshll.u32 [#allocation2], 4
      %s17 = int_to_ptr.vmem [resolvable:$true] %s16
      %22 = dma.hbm_to_vmem [thread:$0]  %s0, 64, %s17, [#allocation3], 16, 16, 1
    $region5: #{tpu_custom_call.1} parent=1 // pred_fallthru
      _
    // Predicated region
    $region6: #{tpu_custom_call.1} parent=1 // pred_check
      _
    $region7: #{tpu_custom_call.1} parent=1 // pred_check_branch
      %24 = sbr.rel (0) target = $region9
    $region8: #{tpu_custom_call.1} parent=1 // pred_region
      %s26 = ssub.s32 64, 64
      %27 = vsyncadd [#allocation6], %s26
      %s28 = sshll.u32 [#allocation5], 4
      %s29 = int_to_ptr.vmem [resolvable:$true] %s28
      %34 = dma.hbm_to_vmem [thread:$0]  %s1, 64, %s29, [#allocation6], 16, 16, 1
    $region9: #{tpu_custom_call.1} parent=1 // pred_fallthru
      _
    // Predicated region
    $region10: #{tpu_custom_call.1} parent=1 // pred_check
      _
    $region11: #{tpu_custom_call.1} parent=1 // pred_check_branch
      %36 = sbr.rel (0) target = $region13
    $region12: #{tpu_custom_call.1} parent=1 // pred_region
      %s38 = ssub.s32 256, 256
      %39 = vsyncadd [#allocation6], %s38
      %s40 = sshll.u32 [#allocation7], 4
      %s41 = int_to_ptr.vmem [resolvable:$true] %s40
      %46 = dma.hbm_to_vmem [thread:$0]  %s2, 256, %s41, [#allocation6], 32, 32, 2
    $region13: #{tpu_custom_call.1} parent=1 // pred_fallthru
      _
    // Predicated region
    $region14: #{tpu_custom_call.1} parent=1 // pred_check
      _
    $region15: #{tpu_custom_call.1} parent=1 // pred_check_branch
      %48 = sbr.rel (0) target = $region17
    $region16: #{tpu_custom_call.1} parent=1 // pred_region
      %49 = dma.done [#allocation3], 64
    $region17: #{tpu_custom_call.1} parent=1 // pred_fallthru
      _
    // Predicated region
    $region18: #{tpu_custom_call.1} parent=1 // pred_check
      _
    $region19: #{tpu_custom_call.1} parent=1 // pred_check_branch
      %51 = sbr.rel (0) target = $region21
    $region20: #{tpu_custom_call.1} parent=1 // pred_region
      %52 = dma.done [#allocation6], 64
    $region21: #{tpu_custom_call.1} parent=1 // pred_fallthru
      _
    // Predicated region
    $region22: #{tpu_custom_call.1} parent=1 // pred_check
      _
    $region23: #{tpu_custom_call.1} parent=1 // pred_check_branch
      %54 = sbr.rel (0) target = $region25
    $region24: #{tpu_custom_call.1} parent=1 // pred_region
      %55 = dma.done [#allocation6], 256
    $region25: #{tpu_custom_call.1} parent=1 // pred_fallthru
      _
    %v56 = vld [vmem:[#allocation2] sm:$0x1]
    %v57 = vld [vmem:[#allocation2 + $0x1] sm:$0x1]
    %v58 = vld [vmem:[#allocation2 + $0x2] sm:$0x1]
    %v59 = vld [vmem:[#allocation2 + $0x3] sm:$0x1]
    %v60 = vld [vmem:[#allocation5] sm:$0x1]
    %v61 = vld [vmem:[#allocation5 + $0x1] sm:$0x1]
    %v62 = vld [vmem:[#allocation5 + $0x2] sm:$0x1]
    %v63 = vld [vmem:[#allocation5 + $0x3] sm:$0x1]
    %v64 = vld [vmem:[#allocation7] sm:$0x3]
    %v65 = vld [vmem:[#allocation7 + $0x2] sm:$0x3]
    %v66 = vld [vmem:[#allocation7 + $0x4] sm:$0x3]
    %v67 = vld [vmem:[#allocation7 + $0x6] sm:$0x3]
    %v68 = vld [vmem:[#allocation7 + $0x8] sm:$0x3]
    %v69 = vld [vmem:[#allocation7 + $0xa] sm:$0x3]
    %v70 = vld [vmem:[#allocation7 + $0xc] sm:$0x3]
    %v71 = vld [vmem:[#allocation7 + $0xe] sm:$0x3]
    %v76 = vlaneseq
    %v77 = vshrl.u32 %v76, 7
    %v78 = vsub.s32 0, %v77
    %v79 = vrot.slane %v56, %v78
    %v80 = vlaneseq
    %v81 = vshrl.u32 %v80, 7
    %v82 = vsub.s32 0, %v81
    %v83 = vrot.slane %v57, %v82
    %v84 = vlaneseq
    %v85 = vshrl.u32 %v84, 7
    %v86 = vsub.s32 0, %v85
    %v87 = vrot.slane %v58, %v86
    %v88 = vlaneseq
    %v89 = vshrl.u32 %v88, 7
    %v90 = vsub.s32 0, %v89
    %v91 = vrot.slane %v59, %v90
    %v96 = vmul.f32 %v64, %v79
    %v97 = vmul.f32 %v65, %v83
    %v98 = vmul.f32 %v66, %v87
    %v99 = vmul.f32 %v67, %v91
    %v100 = vmul.f32 %v68, %v79
    %v101 = vmul.f32 %v69, %v83
    %v102 = vmul.f32 %v70, %v87
    %v103 = vmul.f32 %v71, %v91
    %v108 = vlaneseq
    %v109 = vshrl.u32 %v108, 7
    %v110 = vsub.s32 0, %v109
    %v111 = vrot.slane %v60, %v110
    %v112 = vlaneseq
    %v113 = vshrl.u32 %v112, 7
    %v114 = vsub.s32 0, %v113
    %v115 = vrot.slane %v61, %v114
    %v116 = vlaneseq
    %v117 = vshrl.u32 %v116, 7
    %v118 = vsub.s32 0, %v117
    %v119 = vrot.slane %v62, %v118
    %v120 = vlaneseq
    %v121 = vshrl.u32 %v120, 7
    %v122 = vsub.s32 0, %v121
    %v123 = vrot.slane %v63, %v122
    %v128 = vadd.f32 %v96, %v111
    %v129 = vadd.f32 %v97, %v115
    %v130 = vadd.f32 %v98, %v119
    %v131 = vadd.f32 %v99, %v123
    %v132 = vadd.f32 %v100, %v111
    %v133 = vadd.f32 %v101, %v115
    %v134 = vadd.f32 %v102, %v119
    %v135 = vadd.f32 %v103, %v123
    %136 = vst [vmem:[#allocation8] sm:$0x3] %v128
    %137 = vst [vmem:[#allocation8 + $0x2] sm:$0x3] %v129
    %138 = vst [vmem:[#allocation8 + $0x4] sm:$0x3] %v130
    %139 = vst [vmem:[#allocation8 + $0x6] sm:$0x3] %v131
    %140 = vst [vmem:[#allocation8 + $0x8] sm:$0x3] %v132
    %141 = vst [vmem:[#allocation8 + $0xa] sm:$0x3] %v133
    %142 = vst [vmem:[#allocation8 + $0xc] sm:$0x3] %v134
    %143 = vst [vmem:[#allocation8 + $0xe] sm:$0x3] %v135
    // Predicated region
    $region26: #{tpu_custom_call.1} parent=1 // pred_check
      _
    $region27: #{tpu_custom_call.1} parent=1 // pred_check_branch
      %145 = sbr.rel (0) target = $region29
    $region28: #{tpu_custom_call.1} parent=1 // pred_region
      %s147 = ssub.s32 256, 256
      %148 = vsyncadd [#allocation4], %s147
      %s149 = sshll.u32 [#allocation8], 4
      %s150 = int_to_ptr.vmem [resolvable:$true] %s149
      %155 = dma.vmem_to_hbm [thread:$0]  %s150, 256, %s3, [#allocation4], 32, 32, 2
    $region29: #{tpu_custom_call.1} parent=1 // pred_fallthru
      _
    // Predicated region
    $region30: #{tpu_custom_call.1} parent=1 // pred_check
      _
    $region31: #{tpu_custom_call.1} parent=1 // pred_check_branch
      %157 = sbr.rel (0) target = $region33
    $region32: #{tpu_custom_call.1} parent=1 // pred_region
      %158 = dma.done [#allocation4], 256
    $region33: #{tpu_custom_call.1} parent=1 // pred_fallthru
      _
    %159 = vsyncpa [#allocation3], 1
    %160 = vsyncpa [#allocation6], 1
    %161 = vsyncpa [#allocation4], 1

</llo_original>
